<compile_context>
chip_gen: v7x
topology: tpu7x:2x2x1
jax: 0.10.0
libtpu: 0.0.40
codegen_flags: <defaults>
</compile_context>

<pallas_src>
import functools

import jax
import jax.numpy as jnp
from jax import lax
from jax.experimental import pallas as pl
from jax.experimental.pallas import tpu as pltpu


def _conv_bn_relu_kernel(x_ref, bw_ref, shift_ref, o_ref, xp_ref, *, pad, doff):
    """One batch element per grid step.

    x_ref:     (1, H, W*Cin)            unpadded, channel-packed input
    bw_ref:    (3, W*Cin, Wout*Cout)    banded weights (BN scale, kw taps and
                                        W-padding already folded in)
    shift_ref: (1, Wout*Cout)           folded conv-bias + BN shift (lane-dense)
    o_ref:     (1, Hout, Wout*Cout)     lane-dense output
    xp_ref:    (doff+H+pad, W*Cin)      VMEM scratch holding the H-padded rows;
                                        doff is a multiple of 8 so the data
                                        store below is sublane-aligned.
    """
    H = x_ref.shape[1]
    Hout = o_ref.shape[1]
    lanes = o_ref.shape[2]

    # In-kernel H halo: zero the scratch, then drop the data rows in at a
    # sublane-aligned offset (no wrapper-side jnp.pad HBM round trip).
    xp_ref[...] = jnp.zeros_like(xp_ref)
    xp_ref[doff:doff + H, :] = x_ref[0].astype(xp_ref.dtype)

    # 3x3 conv as 3 banded GEMMs on the MXU:
    #   (Hout, W*Cin) @ (W*Cin, Wout*Cout) accumulated in f32.
    acc = jnp.zeros((Hout, lanes), jnp.float32)
    for kh in range(3):
        r0 = kh + doff - pad              # static row offset per tap
        acc += jnp.dot(xp_ref[r0:r0 + Hout, :], bw_ref[kh],
                       preferred_element_type=jnp.float32)

    # Fused BatchNorm(eval) shift (includes conv bias) + ReLU.
    # TODO(synk): Dropout2d is stochastic only in training mode; at inference it
    #             is the identity, which is what is implemented here.
    o_ref[0] = jnp.maximum(acc + shift_ref[0], 0.0).astype(o_ref.dtype)


def conv_block_forward(x_nhwc, weight, bias, gamma, beta, running_mean,
                       running_var, *, pad=1, eps=1e-5):
    """x_nhwc: (N, H, W, Cin); weight: (3, 3, Cin, Cout) (HWIO)."""
    N, H, W, Cin = x_nhwc.shape
    KH, KW, _, Cout = weight.shape
    assert (KH, KW) == (3, 3)
    H_out = H + 2 * pad - 2
    W_out = W + 2 * pad - 2
    Wp = W + 2 * pad
    lanes = W_out * Cout                     # 16 * 8 = 128 -> lane-dense output

    f32 = jnp.float32
    # Fold BatchNorm (eval) into the weights and a single additive shift.
    scale = (gamma / jnp.sqrt(running_var + eps)).astype(f32)          # (Cout,)
    w_f = weight.astype(f32) * scale                                   # (3,3,Cin,Cout)
    shift = (beta + (bias - running_mean) * scale).astype(f32)         # (Cout,)
    shift_wide = jnp.tile(shift, (W_out,)).reshape(1, lanes)           # (1, lanes)

    # Block-banded weight matrices, one per kh (built once at trace time).
    # Column block w of bw[kh] holds w_f[kh, kw, ci, :] at input row
    # (w + kw - pad)*Cin + ci; rows falling outside [0, W*Cin) are dropped,
    # which implements the W-direction zero padding for free.
    def banded(w_kh):                                   # w_kh: (3, Cin, Cout)
        base = jnp.zeros((Wp * Cin, Cout), f32).at[:3 * Cin].set(
            w_kh.reshape(3 * Cin, Cout))
        cols = [jnp.roll(base, w * Cin, axis=0) for w in range(W_out)]
        full = jnp.concatenate(cols, axis=1)            # (Wp*Cin, W_out*Cout)
        return full[pad * Cin: pad * Cin + W * Cin]     # fold the W padding
    bw = jnp.stack([banded(w_f[kh]) for kh in range(3)])  # (3, W*Cin, lanes)

    # Channel-packed activation layout: width*channels on the lane axis.
    x2 = x_nhwc.reshape(N, H, W * Cin)

    doff = -(-pad // 8) * 8                 # sublane-aligned data offset >= pad
    xp_rows = doff + H + pad

    kernel = functools.partial(_conv_bn_relu_kernel, pad=pad, doff=doff)
    out = pl.pallas_call(
        kernel,
        out_shape=jax.ShapeDtypeStruct((N, H_out, lanes), x_nhwc.dtype),
        grid_spec=pltpu.PrefetchScalarGridSpec(
            num_scalar_prefetch=0,
            grid=(N,),
            in_specs=[
                pl.BlockSpec((1, H, W * Cin), lambda n: (n, 0, 0)),
                pl.BlockSpec((3, W * Cin, lanes), lambda n: (0, 0, 0)),
                pl.BlockSpec((1, lanes), lambda n: (0, 0)),
            ],
            out_specs=pl.BlockSpec((1, H_out, lanes), lambda n: (n, 0, 0)),
            scratch_shapes=[pltpu.VMEM((xp_rows, W * Cin), f32)],
        ),
        compiler_params=pltpu.CompilerParams(
            dimension_semantics=("parallel",)),
    )(x2, bw, shift_wide)
    return out.reshape(N, H_out, W_out, Cout)


def _reference(x_nhwc, weight, bias, gamma, beta, running_mean, running_var,
               *, pad=1, eps=1e-5):
    y = lax.conv_general_dilated(
        x_nhwc, weight,
        window_strides=(1, 1),
        padding=((pad, pad), (pad, pad)),
        dimension_numbers=("NHWC", "HWIO", "NHWC"))
    y = y + bias
    y = (y - running_mean) / jnp.sqrt(running_var + eps) * gamma + beta
    return jnp.maximum(y, 0.0)


if __name__ == "__main__":
    # Small shapes consistent with ConvBlock(in_=4, out_=8, pad=1).
    N, Cin, Hsp, Wsp = 2, 4, 16, 16
    Cout = 8
    pad = 1

    key = jax.random.PRNGKey(0)
    k_x, k_w, k_b, k_g, k_be, k_m, k_v = jax.random.split(key, 7)

    x_nchw = jax.random.normal(k_x, (N, Cin, Hsp, Wsp), jnp.float32)
    x_nhwc = jnp.transpose(x_nchw, (0, 2, 3, 1))  # NCHW -> NHWC (glue)

    # Deterministic synthetic parameters (shapes from nn.Conv2d / nn.BatchNorm2d).
    weight = jax.random.normal(k_w, (3, 3, Cin, Cout), jnp.float32) * 0.1
    bias = jax.random.normal(k_b, (Cout,), jnp.float32) * 0.1
    gamma = 1.0 + 0.1 * jax.random.normal(k_g, (Cout,), jnp.float32)
    beta = 0.1 * jax.random.normal(k_be, (Cout,), jnp.float32)
    running_mean = 0.1 * jax.random.normal(k_m, (Cout,), jnp.float32)
    running_var = jnp.abs(1.0 + 0.1 * jax.random.normal(k_v, (Cout,), jnp.float32))

    out = conv_block_forward(x_nhwc, weight, bias, gamma, beta,
                             running_mean, running_var, pad=pad)
    out = jax.block_until_ready(out)

    ref = _reference(x_nhwc, weight, bias, gamma, beta,
                     running_mean, running_var, pad=pad)
    assert out.shape == (N, Hsp + 2 * pad - 2, Wsp + 2 * pad - 2, Cout)
    assert jnp.allclose(out, ref, atol=1e-4, rtol=1e-4), "mismatch vs reference"

    print("KERNEL_OK")
</pallas_src>

<mosaic_0001>
module attributes {stable_mosaic.version = 11 : i64} {
  func.func @_conv_bn_relu_kernel(%arg0: i32, %arg1: memref<1x16x64xf32, #tpu.memory_space<vmem>>, %arg2: memref<3x64x128xf32, #tpu.memory_space<vmem>>, %arg3: memref<1x128xf32, #tpu.memory_space<vmem>>, %arg4: memref<1x16x128xf32, #tpu.memory_space<vmem>>, %arg5: memref<25x64xf32, #tpu.memory_space<vmem>>) attributes {dimension_semantics = [#tpu.dimension_semantics<parallel>], iteration_bounds = array<i64: 2>, scalar_prefetch = 0 : i64, scratch_operands = 1 : i64, tpu.core_type = #tpu.core_type<tc>, window_params = [{transform_indices = @transform_0, window_bounds = array<i64: 1, 16, 64>}, {pipeline_mode = #tpu.pipeline_mode<synchronous>, transform_indices = @transform_1, window_bounds = array<i64: 3, 64, 128>}, {pipeline_mode = #tpu.pipeline_mode<synchronous>, transform_indices = @transform_2, window_bounds = array<i64: 1, 128>}, {transform_indices = @transform_3, window_bounds = array<i64: 1, 16, 128>}]} {
    %cst = arith.constant 0.000000e+00 : f32
    %0 = vector.broadcast %cst : f32 to vector<25x64xf32>
    %c0 = arith.constant 0 : index
    %c0_0 = arith.constant 0 : index
    %1 = vector.load %arg5[%c0, %c0_0] : memref<25x64xf32, #tpu.memory_space<vmem>>, vector<25x64xf32>
    tpu.vector_store %arg5[%c0, %c0_0], %0 {strides = array<i32>} : memref<25x64xf32, #tpu.memory_space<vmem>>, vector<25x64xf32>,
    %c0_1 = arith.constant 0 : index
    %c0_2 = arith.constant 0 : index
    %c0_3 = arith.constant 0 : index
    %2 = vector.load %arg1[%c0_1, %c0_2, %c0_3] : memref<1x16x64xf32, #tpu.memory_space<vmem>>, vector<1x16x64xf32>
    %3 = vector.shape_cast %2 : vector<1x16x64xf32> to vector<16x64xf32>
    %c8 = arith.constant 8 : index
    %c0_4 = arith.constant 0 : index
    %4 = vector.load %arg5[%c8, %c0_4] : memref<25x64xf32, #tpu.memory_space<vmem>>, vector<16x64xf32>
    tpu.vector_store %arg5[%c8, %c0_4], %3 {strides = array<i32>} : memref<25x64xf32, #tpu.memory_space<vmem>>, vector<16x64xf32>,
    %cst_5 = arith.constant 0.000000e+00 : f32
    %5 = vector.broadcast %cst_5 : f32 to vector<16x128xf32>
    %c7 = arith.constant 7 : index
    %c0_6 = arith.constant 0 : index
    %6 = vector.load %arg5[%c7, %c0_6] : memref<25x64xf32, #tpu.memory_space<vmem>>, vector<16x64xf32>
    %c0_7 = arith.constant 0 : index
    %c0_8 = arith.constant 0 : index
    %c0_9 = arith.constant 0 : index
    %7 = vector.load %arg2[%c0_7, %c0_8, %c0_9] : memref<3x64x128xf32, #tpu.memory_space<vmem>>, vector<1x64x128xf32>
    %8 = vector.shape_cast %7 : vector<1x64x128xf32> to vector<64x128xf32>
    %cst_10 = arith.constant dense<0.000000e+00> : vector<16x128xf32>
    %9 = tpu.matmul %6, %8, %cst_10 {dimension_numbers = #tpu.dot_dimension_numbers<[1], [0], [0], [1], [0, 0, 1, 1], [], []>} : vector<16x64xf32>, vector<64x128xf32>, vector<16x128xf32> -> vector<16x128xf32>
    %10 = arith.addf %5, %9 : vector<16x128xf32>
    %c8_11 = arith.constant 8 : index
    %c0_12 = arith.constant 0 : index
    %11 = vector.load %arg5[%c8_11, %c0_12] : memref<25x64xf32, #tpu.memory_space<vmem>>, vector<16x64xf32>
    %c1 = arith.constant 1 : index
    %c0_13 = arith.constant 0 : index
    %c0_14 = arith.constant 0 : index
    %12 = vector.load %arg2[%c1, %c0_13, %c0_14] : memref<3x64x128xf32, #tpu.memory_space<vmem>>, vector<1x64x128xf32>
    %13 = vector.shape_cast %12 : vector<1x64x128xf32> to vector<64x128xf32>
    %cst_15 = arith.constant dense<0.000000e+00> : vector<16x128xf32>
    %14 = tpu.matmul %11, %13, %cst_15 {dimension_numbers = #tpu.dot_dimension_numbers<[1], [0], [0], [1], [0, 0, 1, 1], [], []>} : vector<16x64xf32>, vector<64x128xf32>, vector<16x128xf32> -> vector<16x128xf32>
    %15 = arith.addf %10, %14 : vector<16x128xf32>
    %c9 = arith.constant 9 : index
    %c0_16 = arith.constant 0 : index
    %16 = vector.load %arg5[%c9, %c0_16] : memref<25x64xf32, #tpu.memory_space<vmem>>, vector<16x64xf32>
    %c2 = arith.constant 2 : index
    %c0_17 = arith.constant 0 : index
    %c0_18 = arith.constant 0 : index
    %17 = vector.load %arg2[%c2, %c0_17, %c0_18] : memref<3x64x128xf32, #tpu.memory_space<vmem>>, vector<1x64x128xf32>
    %18 = vector.shape_cast %17 : vector<1x64x128xf32> to vector<64x128xf32>
    %cst_19 = arith.constant dense<0.000000e+00> : vector<16x128xf32>
    %19 = tpu.matmul %16, %18, %cst_19 {dimension_numbers = #tpu.dot_dimension_numbers<[1], [0], [0], [1], [0, 0, 1, 1], [], []>} : vector<16x64xf32>, vector<64x128xf32>, vector<16x128xf32> -> vector<16x128xf32>
    %20 = arith.addf %15, %19 : vector<16x128xf32>
    %c0_20 = arith.constant 0 : index
    %c0_21 = arith.constant 0 : index
    %21 = vector.load %arg3[%c0_20, %c0_21] : memref<1x128xf32, #tpu.memory_space<vmem>>, vector<1x128xf32>
    %22 = vector.shape_cast %21 : vector<1x128xf32> to vector<128xf32>
    %23 = vector.shape_cast %22 : vector<128xf32> to vector<1x128xf32>
    %24 = vector.broadcast %23 : vector<1x128xf32> to vector<16x128xf32>
    %25 = arith.addf %20, %24 : vector<16x128xf32>
    %cst_22 = arith.constant 0.000000e+00 : f32
    %26 = vector.broadcast %cst_22 : f32 to vector<16x128xf32>
    %27 = arith.maximumf %25, %26 : vector<16x128xf32>
    %c0_23 = arith.constant 0 : index
    %c0_24 = arith.constant 0 : index
    %c0_25 = arith.constant 0 : index
    %28 = vector.load %arg4[%c0_23, %c0_24, %c0_25] : memref<1x16x128xf32, #tpu.memory_space<vmem>>, vector<1x16x128xf32>
    %29 = vector.shape_cast %28 : vector<1x16x128xf32> to vector<16x128xf32>
    %30 = vector.shape_cast %27 : vector<16x128xf32> to vector<1x16x128xf32>
    tpu.vector_store %arg4[%c0_23, %c0_24, %c0_25], %30 {strides = array<i32>} : memref<1x16x128xf32, #tpu.memory_space<vmem>>, vector<1x16x128xf32>,
    return
  }
  func.func @transform_0(%arg0: i32) -> (i32, i32, i32) {
    %c0_i32 = arith.constant 0 : i32
    %c0_i32_0 = arith.constant 0 : i32
    %c0_i32_1 = arith.constant 0 : i32
    return %arg0, %c0_i32, %c0_i32_0 : i32, i32, i32
  }
  func.func @transform_1(%arg0: i32) -> (i32, i32, i32) {
    %c0_i32 = arith.constant 0 : i32
    %c0_i32_0 = arith.constant 0 : i32
    %c0_i32_1 = arith.constant 0 : i32
    %c0_i32_2 = arith.constant 0 : i32
    return %c0_i32, %c0_i32_0, %c0_i32_1 : i32, i32, i32
  }
  func.func @transform_2(%arg0: i32) -> (i32, i32) {
    %c0_i32 = arith.constant 0 : i32
    %c0_i32_0 = arith.constant 0 : i32
    %c0_i32_1 = arith.constant 0 : i32
    return %c0_i32, %c0_i32_0 : i32, i32
  }
  func.func @transform_3(%arg0: i32) -> (i32, i32, i32) {
    %c0_i32 = arith.constant 0 : i32
    %c0_i32_0 = arith.constant 0 : i32
    %c0_i32_1 = arith.constant 0 : i32
    return %arg0, %c0_i32, %c0_i32_0 : i32, i32, i32
  }
}

</mosaic_0001>

<llo_original>
// kernel: tpu_custom_call.1
$region0: #{tpu_custom_call.1}
  #allocation0 [shape = 'u32[]', space=smem, size = 0x4, offset = 0x4, fixed_abs, tag = 'smem constant byte address 0x4 - core index']
  #allocation1 [shape = 'u32[144,128]{1,0:T(1,128)}', space=vmem, size = 0x12000, scoped, tag = 'internal scratch']
  #allocation2 [shape = 'f32[25,64]{1,0:T(8,128)}', space=vmem, size = 0x4000, scoped, tag = 'scratch operand']
  %s0 = inlined_call_operand.hbm [shape: f32[2,16,64], index: 0, kind: input, shape index: {}]
  %s1 = inlined_call_operand.hbm [shape: f32[3,64,128], index: 1, kind: input, shape index: {}]
  %s2 = inlined_call_operand.vmem [shape: f32[1,128], index: 2, kind: input, shape index: {}]
  %s3 = inlined_call_operand.hbm [shape: f32[2,16,128], index: 3, kind: output, shape index: {}]
  %s4 = sld [smem:[#allocation0]]
  $region53: #{tpu_custom_call.1} parent=0
    _
  %s6 = ssub.s32 1, %s4
  %s7 = scalar_select 0, %s6, %s4
  $region1: #{tpu_custom_call.1} parent=0
    #allocation3 [shape = 'u8[16384]{0}', space=vmem, size = 0x4000, scoped, tag = 'input window, operand 0']
    #allocation4 [shape = 's32[2]{0}', space=sflag, size = 0x8, scoped, tag = 'scoped memory for tpu_custom_call.1']
    #allocation5 [shape = 's32[2]{0}', space=sflag, size = 0x8, scoped, tag = 'scoped memory for tpu_custom_call.1']
    #allocation6 [shape = 'u8[98304]{0}', space=vmem, size = 0x18000, scoped, tag = 'input window, operand 1, single buffered']
    #allocation7 [shape = 's32[1]{0}', space=sflag, size = 0x4, scoped, tag = 'scoped memory for tpu_custom_call.1']
    #allocation8 [shape = 'u8[16384]{0}', space=vmem, size = 0x4000, scoped, tag = 'output window, operand 0']
    %8 = vsyncpa [#allocation4], 0
    %s9 = scalar_lea.sflag [#allocation4], 1
    %10 = vsyncpa %s9, 0
    %11 = vsyncpa [#allocation7], 0
    %12 = vsyncpa [#allocation5], 0
    %s13 = scalar_lea.sflag [#allocation5], 1
    %14 = vsyncpa %s13, 0
    loop: start=0, step=1, limit=4
    $region2: #{tpu_custom_call.1} parent=1 // loop_pre_header
      _
    $region3: #{tpu_custom_call.1} parent=1 // loop_header
      %s16 = sphi 0, %s20
      %p17 = scmp.ge.s32.totalorder %s16, 4
      %s26 = sphi 0, %s28
      %s29 = sphi 0, %s26
      %s30 = sphi 0, %s29
      %s46 = sphi 0, %s30
      %s50 = sphi 0, %s50
      %s52 = sphi 0, %s50
      %s53 = sphi 0, %s52
      %s67 = sphi 0, %s53
      %s71 = sphi 0, %s71
      %s73 = sphi 0, %s71
      %s74 = sphi 0, %s73
      %s88 = sphi 0, %s74
      %s94 = sphi 0, %s96
      %s97 = sphi 0, %s94
      %s98 = sphi 0, %s97
      %s114 = sphi 0, %s98
    $region4: #{tpu_custom_call.1} parent=1 // loop_header_branch
      %19 = sbr.rel (%p17) target = $region8
    $region5: #{tpu_custom_call.1} parent=1 // loop_body
      %s21 = ssub.s32 %s16, 1
      %s22 = ssub.s32 %s16, 2
      %s23 = sadd.s32 %s16, 1
      %s24 = ssub.s32 %s16, %s23
      %p25 = scmp.eq.s32.totalorder %s24, 0
      %s27 = sadd.s32 %s26, 1
      %s28 = scalar_select %p25, %s26, %s27
      %p31 = pneg %p25
      %p32 = scmp.eq.s32.totalorder %s16, 1
      %p33 = por %p31, %p32
      %p34 = scmp.ne.s32.totalorder %s26, %s29
      %p35 = scmp.eq.s32.totalorder %s16, 0
      %p36 = por %p34, %p35
      %p37 = scmp.ne.s32.totalorder %s26, %s29
      %p38 = scmp.eq.s32.totalorder %s21, 1
      %p39 = por %p37, %p38
      %p40 = scmp.ne.s32.totalorder %s29, %s30
      %p41 = scmp.eq.s32.totalorder %s21, 0
      %p42 = por %p40, %p41
      %p43 = scmp.ne.s32.totalorder %s29, %s30
      %p44 = scmp.eq.s32.totalorder %s22, 1
      %p45 = por %p43, %p44
      %p47 = scmp.ne.s32.totalorder %s30, %s46
      %p48 = scmp.eq.s32.totalorder %s22, 0
      %p49 = por %p47, %p48
      %s51 = sadd.s32 %s50, 1
      %p54 = scmp.eq.s32.totalorder %s16, 1
      %p55 = scmp.ne.s32.totalorder %s50, %s52
      %p56 = scmp.eq.s32.totalorder %s16, 0
      %p57 = por %p55, %p56
      %p58 = scmp.ne.s32.totalorder %s50, %s52
      %p59 = scmp.eq.s32.totalorder %s21, 1
      %p60 = por %p58, %p59
      %p61 = scmp.ne.s32.totalorder %s52, %s53
      %p62 = scmp.eq.s32.totalorder %s21, 0
      %p63 = por %p61, %p62
      %p64 = scmp.ne.s32.totalorder %s52, %s53
      %p65 = scmp.eq.s32.totalorder %s22, 1
      %p66 = por %p64, %p65
      %p68 = scmp.ne.s32.totalorder %s53, %s67
      %p69 = scmp.eq.s32.totalorder %s22, 0
      %p70 = por %p68, %p69
      %s72 = sadd.s32 %s71, 1
      %p75 = scmp.eq.s32.totalorder %s16, 1
      %p76 = scmp.ne.s32.totalorder %s71, %s73
      %p77 = scmp.eq.s32.totalorder %s16, 0
      %p78 = por %p76, %p77
      %p79 = scmp.ne.s32.totalorder %s71, %s73
      %p80 = scmp.eq.s32.totalorder %s21, 1
      %p81 = por %p79, %p80
      %p82 = scmp.ne.s32.totalorder %s73, %s74
      %p83 = scmp.eq.s32.totalorder %s21, 0
      %p84 = por %p82, %p83
      %p85 = scmp.ne.s32.totalorder %s73, %s74
      %p86 = scmp.eq.s32.totalorder %s22, 1
      %p87 = por %p85, %p86
      %p89 = scmp.ne.s32.totalorder %s74, %s88
      %p90 = scmp.eq.s32.totalorder %s22, 0
      %p91 = por %p89, %p90
      %s92 = ssub.s32 %s16, %s23
      %p93 = scmp.eq.s32.totalorder %s92, 0
      %s95 = sadd.s32 %s94, 1
      %s96 = scalar_select %p93, %s94, %s95
      %p99 = pneg %p93
      %p100 = scmp.eq.s32.totalorder %s16, 1
      %p101 = por %p99, %p100
      %p102 = scmp.ne.s32.totalorder %s94, %s97
      %p103 = scmp.eq.s32.totalorder %s16, 0
      %p104 = por %p102, %p103
      %p105 = scmp.ne.s32.totalorder %s94, %s97
      %p106 = scmp.eq.s32.totalorder %s21, 1
      %p107 = por %p105, %p106
      %p108 = scmp.ne.s32.totalorder %s97, %s98
      %p109 = scmp.eq.s32.totalorder %s21, 0
      %p110 = por %p108, %p109
      %p111 = scmp.ne.s32.totalorder %s97, %s98
      %p112 = scmp.eq.s32.totalorder %s22, 1
      %p113 = por %p111, %p112
      %p115 = scmp.ne.s32.totalorder %s98, %s114
      %p116 = scmp.eq.s32.totalorder %s22, 0
      %p117 = por %p115, %p116
      %p118 = scmp.le.s32.totalorder 1, %s16
      %p119 = scmp.lt.s32.totalorder %s16, 3
      %p120 = pnand %p118, %p119
      %p121 = pneg %p120
      // Predicated region
      $region9: #{tpu_custom_call.1} parent=5 // pred_check
        _
      $region10: #{tpu_custom_call.1} parent=5 // pred_check_branch
        %123 = sbr.rel (%p120) target = $region12
      $region11: #{tpu_custom_call.1} parent=5 // pred_region
        %s124 = ssub.s32 %s16, 1
        // Predicated region
        $region13: #{tpu_custom_call.1} parent=11 // pred_check
          %p125 = pneg %p63
        $region14: #{tpu_custom_call.1} parent=11 // pred_check_branch
          %127 = sbr.rel (%p125) target = $region16
        $region15: #{tpu_custom_call.1} parent=11 // pred_region
          %s129 = ssub.s32 3072, 3072
          %130 = vsyncadd [#allocation7], %s129
          %s131 = sshll.u32 [#allocation6], 4
          %s132 = int_to_ptr.vmem [resolvable:$true] %s131
          %137 = dma.hbm_to_vmem [thread:$0]  %s1, 3072, %s132, [#allocation7], 128, 128, 8
        $region16: #{tpu_custom_call.1} parent=11 // pred_fallthru
          _
        // Predicated region
        $region17: #{tpu_custom_call.1} parent=11 // pred_check
          %p138 = pneg %p84
        $region18: #{tpu_custom_call.1} parent=11 // pred_check_branch
          %140 = sbr.rel (%p138) target = $region20
        $region19: #{tpu_custom_call.1} parent=11 // pred_region
          _
        $region20: #{tpu_custom_call.1} parent=11 // pred_fallthru
          _
      $region12: #{tpu_custom_call.1} parent=5 // pred_fallthru
        _
      %p141 = scmp.lt.s32.totalorder %s16, 2
      // Predicated region
      $region21: #{tpu_custom_call.1} parent=5 // pred_check
        %p142 = pneg %p141
      $region22: #{tpu_custom_call.1} parent=5 // pred_check_branch
        %144 = sbr.rel (%p142) target = $region24
      $region23: #{tpu_custom_call.1} parent=5 // pred_region
        // Predicated region
        $region25: #{tpu_custom_call.1} parent=23 // pred_check
          %p145 = pneg %p36
        $region26: #{tpu_custom_call.1} parent=23 // pred_check_branch
          %147 = sbr.rel (%p145) target = $region28
        $region27: #{tpu_custom_call.1} parent=23 // pred_region
          %s148 = sand.u32 %s26, 1
          %s149 = scalar_lea.sflag [#allocation4], %s148
          %s150 = sand.u32 %s26, 1
          %s151 = smul.addr %s150, 16
          %s152 = scalar_lea.vmem [#allocation3], %s151
          %s154 = ssub.s32 256, 256
          %155 = vsyncadd %s149, %s154
          %s156 = smul.addr %s16, 2
          %s157 = smul.addr %s156, 128
          %s158 = scalar_lea.hbm %s0, %s157
          %s159 = sshll.u32 %s152, 4
          %s160 = int_to_ptr.vmem [resolvable:$true] %s159
          %165 = dma.hbm_to_vmem [thread:$0]  %s158, 256, %s160, %s149, 128, 128, 8
        $region28: #{tpu_custom_call.1} parent=23 // pred_fallthru
          _
      $region24: #{tpu_custom_call.1} parent=5 // pred_fallthru
        _
      %p166 = scmp.le.s32.totalorder 1, %s16
      %p167 = scmp.lt.s32.totalorder %s16, 3
      %p168 = pnand %p166, %p167
      %p169 = pneg %p168
      // Predicated region
      $region29: #{tpu_custom_call.1} parent=5 // pred_check
        _
      $region30: #{tpu_custom_call.1} parent=5 // pred_check_branch
        %171 = sbr.rel (%p168) target = $region32
      $region31: #{tpu_custom_call.1} parent=5 // pred_region
        %s172 = ssub.s32 %s16, 1
        %s173 = sand.u32 %s29, 1
        %s174 = scalar_lea.sflag [#allocation4], %s173
        %s175 = sand.u32 %s29, 1
        %s176 = smul.addr %s175, 16
        %s177 = scalar_lea.vmem [#allocation3], %s176
        // Predicated region
        $region33: #{tpu_custom_call.1} parent=31 // pred_check
          %p178 = pneg %p42
        $region34: #{tpu_custom_call.1} parent=31 // pred_check_branch
          %180 = sbr.rel (%p178) target = $region36
        $region35: #{tpu_custom_call.1} parent=31 // pred_region
          %181 = dma.done %s174, 256
        $region36: #{tpu_custom_call.1} parent=31 // pred_fallthru
          _
        // Predicated region
        $region37: #{tpu_custom_call.1} parent=31 // pred_check
          %p182 = pneg %p63
        $region38: #{tpu_custom_call.1} parent=31 // pred_check_branch
          %184 = sbr.rel (%p182) target = $region40
        $region39: #{tpu_custom_call.1} parent=31 // pred_region
          %185 = dma.done [#allocation7], 3072
        $region40: #{tpu_custom_call.1} parent=31 // pred_fallthru
          _
        %s186 = sand.u32 %s29, 1
        %s187 = scalar_lea.sflag [#allocation4], %s186
        %s188 = sand.u32 %s29, 1
        %s189 = smul.addr %s188, 16
        %s190 = scalar_lea.vmem [#allocation3], %s189
        %p191 = pneg %p42
        %p192 = pneg %p39
        %p193 = pneg %p63
        %p194 = pneg %p60
        %p195 = pneg %p84
        %p196 = pneg %p81
        %p197 = pneg %p110
        %p198 = pneg %p107
        %s199 = sand.u32 %s97, 1
        %s200 = scalar_lea.sflag [#allocation5], %s199
        %s201 = sand.u32 %s97, 1
        %s202 = smul.addr %s201, 16
        %s203 = scalar_lea.vmem [#allocation8], %s202
        %vm204 = vcmask 523264
        %205 = vst.msk [vmem:[#allocation2] sm:$0xff] %vm204, 0.0
        %206 = vst.msk [vmem:[#allocation2 + $0x8] sm:$0xff] %vm204, 0.0
        %207 = vst.msk [vmem:[#allocation2 + $0x10] sm:$0xff] %vm204, 0.0
        %vm208 = vcmask 516096
        %209 = vst.msk [vmem:[#allocation2 + $0x18] sm:$0x1] %vm208, 0.0
        %v210 = vld [vmem:[%s177] sm:$0xff]
        %v211 = vld [vmem:[%s177 + $0x8] sm:$0xff]
        %212 = vst.msk [vmem:[#allocation2 + $0x8] sm:$0xff] %vm204, %v210
        %213 = vst.msk [vmem:[#allocation2 + $0x10] sm:$0xff] %vm204, %v211
        %v214 = vld [vmem:[#allocation2 + $0x7] sm:$0xff]
        %v215 = vld [vmem:[#allocation2 + $0xf] sm:$0xff]
        %v216 = vld [vmem:[#allocation6] sm:$0xff]
        %v217 = vld [vmem:[#allocation6 + $0x8] sm:$0xff]
        %v218 = vld [vmem:[#allocation6 + $0x10] sm:$0xff]
        %v219 = vld [vmem:[#allocation6 + $0x18] sm:$0xff]
        %v220 = vld [vmem:[#allocation6 + $0x20] sm:$0xff]
        %v221 = vld [vmem:[#allocation6 + $0x28] sm:$0xff]
        %v222 = vld [vmem:[#allocation6 + $0x30] sm:$0xff]
        %v223 = vld [vmem:[#allocation6 + $0x38] sm:$0xff]
        %v224 = vld [vmem:[#allocation2 + $0x8] sm:$0xff]
        %v225 = vld [vmem:[#allocation2 + $0x10] sm:$0xff]
        %s226 = scalar_lea.vmem [#allocation6], 64
        %v227 = vld [vmem:[%s226] sm:$0xff]
        %v228 = vld [vmem:[%s226 + $0x8] sm:$0xff]
        %v229 = vld [vmem:[%s226 + $0x10] sm:$0xff]
        %v230 = vld [vmem:[%s226 + $0x18] sm:$0xff]
        %v231 = vld [vmem:[%s226 + $0x20] sm:$0xff]
        %v232 = vld [vmem:[%s226 + $0x28] sm:$0xff]
        %v233 = vld [vmem:[%s226 + $0x30] sm:$0xff]
        %v234 = vld [vmem:[%s226 + $0x38] sm:$0xff]
        %v236 = vsel %vm204, %v224, 0
        %v239 = vsel %vm204, %v225, 0
        %241 = vmatprep.subr.mxu0 0.0
        %242 = vmatpush1.msra.mxu0 %v227
        %243 = vmatprep.subr.mxu0 0.0
        %244 = vmatpush1.msra.mxu0 %v228
        %245 = vmatprep.subr.mxu0 0.0
        %246 = vmatpush1.msra.mxu0 %v229
        %247 = vmatprep.subr.mxu0 0.0
        %248 = vmatpush1.msra.mxu0 %v230
        %249 = vmatprep.subr.mxu0 0.0
        %250 = vmatpush1.msra.mxu0 %v231
        %251 = vmatprep.subr.mxu0 0.0
        %252 = vmatpush1.msra.mxu0 %v232
        %253 = vmatprep.subr.mxu0 0.0
        %254 = vmatpush1.msra.mxu0 %v233
        %255 = vmatprep.subr.mxu0 0.0
        %256 = vmatpush1.msra.mxu0 %v234
        %257 = vmatprep.subr.mxu0 0.0
        %258 = vmatpush1.msra.mxu0 0.0
        %259 = vmatprep.subr.mxu0 0.0
        %260 = vmatpush1.msra.mxu0 0.0
        %261 = vmatprep.subr.mxu0 0.0
        %262 = vmatpush1.msra.mxu0 0.0
        %263 = vmatprep.subr.mxu0 0.0
        %264 = vmatpush1.msra.mxu0 0.0
        %265 = vmatprep.subr.mxu0 0.0
        %266 = vmatpush1.msra.mxu0 0.0
        %267 = vmatprep.subr.mxu0 0.0
        %268 = vmatpush1.msra.mxu0 0.0
        %269 = vmatprep.subr.mxu0 0.0
        %270 = vmatpush1.msra.mxu0 0.0
        %271 = vmatprep.subr.mxu0 0.0
        %272 = vmatpush1.msra.mxu0 0.0
        %273 = vmatprep.subr.mxu0 0.0
        %274 = vmatpush1.msra.mxu0 0.0
        %275 = vmatprep.subr.mxu0 0.0
        %276 = vmatpush1.msra.mxu0 0.0
        %277 = vmatprep.subr.mxu0 0.0
        %278 = vmatpush1.msra.mxu0 0.0
        %279 = vmatprep.subr.mxu0 0.0
        %280 = vmatpush1.msra.mxu0 0.0
        %281 = vmatprep.subr.mxu0 0.0
        %282 = vmatpush1.msra.mxu0 0.0
        %283 = vmatprep.subr.mxu0 0.0
        %284 = vmatpush1.msra.mxu0 0.0
        %285 = vmatprep.subr.mxu0 0.0
        %286 = vmatpush1.msra.mxu0 0.0
        %287 = vmatprep.subr.mxu0 0.0
        %288 = vmatpush1.msra.mxu0 0.0
        %289 = vmatprep.subr.mxu0 0.0
        %290 = vmatpush1.msra.mxu0 0.0
        %291 = vmatprep.subr.mxu0 0.0
        %292 = vmatpush1.msra.mxu0 0.0
        %293 = vmatprep.subr.mxu0 0.0
        %294 = vmatpush1.msra.mxu0 0.0
        %295 = vmatprep.subr.mxu0 0.0
        %296 = vmatpush1.msra.mxu0 0.0
        %297 = vmatprep.subr.mxu0 0.0
        %298 = vmatpush1.msra.mxu0 0.0
        %299 = vmatprep.subr.mxu0 0.0
        %300 = vmatpush1.msra.mxu0 0.0
        %301 = vmatprep.subr.mxu0 0.0
        %302 = vmatpush1.msra.mxu0 0.0
        %303 = vmatprep.subr.mxu0 0.0
        %304 = vmatpush1.msra.mxu0 0.0
        %305 = vmatprep.mubr.f32.mxu0 0.0
        %306 = vmatmul.mubr.f32.gmra.mrb[0].mxu0 %v236
        %v307 = vpop.f32.mrb[0].mxu0
        %v308 = vadd.f32 0.0, %v307
        %v309 = vpop.f32.mrb[0].mxu0
        %310 = vmatprep.mubr.f32.mxu0 0.0
        %311 = vmatmul.mubr.f32.gmra.mrb[0].mxu0 %v239
        %v312 = vpop.f32.mrb[0].mxu0
        %v313 = vadd.f32 0.0, %v312
        %v314 = vpop.f32.mrb[0].mxu0
        %315 = vdwg.mxu0
        %v317 = vsel %vm204, %v214, 0
        %v320 = vsel %vm204, %v215, 0
        %322 = vmatprep.subr.mxu0 0.0
        %323 = vmatpush1.msra.mxu0 %v216
        %324 = vmatprep.subr.mxu0 0.0
        %325 = vmatpush1.msra.mxu0 %v217
        %326 = vmatprep.subr.mxu0 0.0
        %327 = vmatpush1.msra.mxu0 %v218
        %328 = vmatprep.subr.mxu0 0.0
        %329 = vmatpush1.msra.mxu0 %v219
        %330 = vmatprep.subr.mxu0 0.0
        %331 = vmatpush1.msra.mxu0 %v220
        %332 = vmatprep.subr.mxu0 0.0
        %333 = vmatpush1.msra.mxu0 %v221
        %334 = vmatprep.subr.mxu0 0.0
        %335 = vmatpush1.msra.mxu0 %v222
        %336 = vmatprep.subr.mxu0 0.0
        %337 = vmatpush1.msra.mxu0 %v223
        %338 = vmatprep.subr.mxu0 0.0
        %339 = vmatpush1.msra.mxu0 0.0
        %340 = vmatprep.subr.mxu0 0.0
        %341 = vmatpush1.msra.mxu0 0.0
        %342 = vmatprep.subr.mxu0 0.0
        %343 = vmatpush1.msra.mxu0 0.0
        %344 = vmatprep.subr.mxu0 0.0
        %345 = vmatpush1.msra.mxu0 0.0
        %346 = vmatprep.subr.mxu0 0.0
        %347 = vmatpush1.msra.mxu0 0.0
        %348 = vmatprep.subr.mxu0 0.0
        %349 = vmatpush1.msra.mxu0 0.0
        %350 = vmatprep.subr.mxu0 0.0
        %351 = vmatpush1.msra.mxu0 0.0
        %352 = vmatprep.subr.mxu0 0.0
        %353 = vmatpush1.msra.mxu0 0.0
        %354 = vmatprep.subr.mxu0 0.0
        %355 = vmatpush1.msra.mxu0 0.0
        %356 = vmatprep.subr.mxu0 0.0
        %357 = vmatpush1.msra.mxu0 0.0
        %358 = vmatprep.subr.mxu0 0.0
        %359 = vmatpush1.msra.mxu0 0.0
        %360 = vmatprep.subr.mxu0 0.0
        %361 = vmatpush1.msra.mxu0 0.0
        %362 = vmatprep.subr.mxu0 0.0
        %363 = vmatpush1.msra.mxu0 0.0
        %364 = vmatprep.subr.mxu0 0.0
        %365 = vmatpush1.msra.mxu0 0.0
        %366 = vmatprep.subr.mxu0 0.0
        %367 = vmatpush1.msra.mxu0 0.0
        %368 = vmatprep.subr.mxu0 0.0
        %369 = vmatpush1.msra.mxu0 0.0
        %370 = vmatprep.subr.mxu0 0.0
        %371 = vmatpush1.msra.mxu0 0.0
        %372 = vmatprep.subr.mxu0 0.0
        %373 = vmatpush1.msra.mxu0 0.0
        %374 = vmatprep.subr.mxu0 0.0
        %375 = vmatpush1.msra.mxu0 0.0
        %376 = vmatprep.subr.mxu0 0.0
        %377 = vmatpush1.msra.mxu0 0.0
        %378 = vmatprep.subr.mxu0 0.0
        %379 = vmatpush1.msra.mxu0 0.0
        %380 = vmatprep.subr.mxu0 0.0
        %381 = vmatpush1.msra.mxu0 0.0
        %382 = vmatprep.subr.mxu0 0.0
        %383 = vmatpush1.msra.mxu0 0.0
        %384 = vmatprep.subr.mxu0 0.0
        %385 = vmatpush1.msra.mxu0 0.0
        %386 = vmatprep.mubr.f32.mxu0 0.0
        %387 = vmatmul.mubr.f32.gmra.mrb[0].mxu0 %v317
        %v388 = vpop.f32.mrb[0].mxu0
        %v389 = vadd.f32 %v308, %v388
        %v390 = vpop.f32.mrb[0].mxu0
        %391 = vmatprep.mubr.f32.mxu0 0.0
        %392 = vmatmul.mubr.f32.gmra.mrb[0].mxu0 %v320
        %v393 = vpop.f32.mrb[0].mxu0
        %v394 = vadd.f32 %v313, %v393
        %v395 = vpop.f32.mrb[0].mxu0
        %396 = vdwg.mxu0
        %v397 = vld [vmem:[#allocation2 + $0x9] sm:$0xff]
        %v398 = vld [vmem:[#allocation2 + $0x11] sm:$0xff]
        %s399 = scalar_lea.vmem [#allocation6], 128
        %v400 = vld [vmem:[%s399] sm:$0xff]
        %v401 = vld [vmem:[%s399 + $0x8] sm:$0xff]
        %v402 = vld [vmem:[%s399 + $0x10] sm:$0xff]
        %v403 = vld [vmem:[%s399 + $0x18] sm:$0xff]
        %v404 = vld [vmem:[%s399 + $0x20] sm:$0xff]
        %v405 = vld [vmem:[%s399 + $0x28] sm:$0xff]
        %v406 = vld [vmem:[%s399 + $0x30] sm:$0xff]
        %v407 = vld [vmem:[%s399 + $0x38] sm:$0xff]
        %v409 = vsel %vm204, %v397, 0
        %v412 = vsel %vm204, %v398, 0
        %414 = vmatprep.subr.mxu0 0.0
        %415 = vmatpush1.msra.mxu0 %v400
        %416 = vmatprep.subr.mxu0 0.0
        %417 = vmatpush1.msra.mxu0 %v401
        %418 = vmatprep.subr.mxu0 0.0
        %419 = vmatpush1.msra.mxu0 %v402
        %420 = vmatprep.subr.mxu0 0.0
        %421 = vmatpush1.msra.mxu0 %v403
        %422 = vmatprep.subr.mxu0 0.0
        %423 = vmatpush1.msra.mxu0 %v404
        %424 = vmatprep.subr.mxu0 0.0
        %425 = vmatpush1.msra.mxu0 %v405
        %426 = vmatprep.subr.mxu0 0.0
        %427 = vmatpush1.msra.mxu0 %v406
        %428 = vmatprep.subr.mxu0 0.0
        %429 = vmatpush1.msra.mxu0 %v407
        %430 = vmatprep.subr.mxu0 0.0
        %431 = vmatpush1.msra.mxu0 0.0
        %432 = vmatprep.subr.mxu0 0.0
        %433 = vmatpush1.msra.mxu0 0.0
        %434 = vmatprep.subr.mxu0 0.0
        %435 = vmatpush1.msra.mxu0 0.0
        %436 = vmatprep.subr.mxu0 0.0
        %437 = vmatpush1.msra.mxu0 0.0
        %438 = vmatprep.subr.mxu0 0.0
        %439 = vmatpush1.msra.mxu0 0.0
        %440 = vmatprep.subr.mxu0 0.0
        %441 = vmatpush1.msra.mxu0 0.0
        %442 = vmatprep.subr.mxu0 0.0
        %443 = vmatpush1.msra.mxu0 0.0
        %444 = vmatprep.subr.mxu0 0.0
        %445 = vmatpush1.msra.mxu0 0.0
        %446 = vmatprep.subr.mxu0 0.0
        %447 = vmatpush1.msra.mxu0 0.0
        %448 = vmatprep.subr.mxu0 0.0
        %449 = vmatpush1.msra.mxu0 0.0
        %450 = vmatprep.subr.mxu0 0.0
        %451 = vmatpush1.msra.mxu0 0.0
        %452 = vmatprep.subr.mxu0 0.0
        %453 = vmatpush1.msra.mxu0 0.0
        %454 = vmatprep.subr.mxu0 0.0
        %455 = vmatpush1.msra.mxu0 0.0
        %456 = vmatprep.subr.mxu0 0.0
        %457 = vmatpush1.msra.mxu0 0.0
        %458 = vmatprep.subr.mxu0 0.0
        %459 = vmatpush1.msra.mxu0 0.0
        %460 = vmatprep.subr.mxu0 0.0
        %461 = vmatpush1.msra.mxu0 0.0
        %462 = vmatprep.subr.mxu0 0.0
        %463 = vmatpush1.msra.mxu0 0.0
        %464 = vmatprep.subr.mxu0 0.0
        %465 = vmatpush1.msra.mxu0 0.0
        %466 = vmatprep.subr.mxu0 0.0
        %467 = vmatpush1.msra.mxu0 0.0
        %468 = vmatprep.subr.mxu0 0.0
        %469 = vmatpush1.msra.mxu0 0.0
        %470 = vmatprep.subr.mxu0 0.0
        %471 = vmatpush1.msra.mxu0 0.0
        %472 = vmatprep.subr.mxu0 0.0
        %473 = vmatpush1.msra.mxu0 0.0
        %474 = vmatprep.subr.mxu0 0.0
        %475 = vmatpush1.msra.mxu0 0.0
        %476 = vmatprep.subr.mxu0 0.0
        %477 = vmatpush1.msra.mxu0 0.0
        %478 = vmatprep.mubr.f32.mxu0 0.0
        %479 = vmatmul.mubr.f32.gmra.mrb[0].mxu0 %v409
        %v480 = vpop.f32.mrb[0].mxu0
        %v481 = vadd.f32 0.0, %v480
        %v482 = vpop.f32.mrb[0].mxu0
        %483 = vmatprep.mubr.f32.mxu0 0.0
        %484 = vmatmul.mubr.f32.gmra.mrb[0].mxu0 %v412
        %v485 = vpop.f32.mrb[0].mxu0
        %v486 = vadd.f32 0.0, %v485
        %v487 = vpop.f32.mrb[0].mxu0
        %488 = vdwg.mxu0
        %v489 = vadd.f32 %v389, %v481
        %v490 = vadd.f32 %v394, %v486
        %v491 = vld [vmem:[%s2] sm:$0x1]
        %v493 = vlaneseq
        %v494 = vshrl.u32 %v493, 7
        %v495 = vsub.s32 0, %v494
        %v496 = vrot.slane %v491, %v495
        %v498 = vadd.f32 %v489, %v496
        %v499 = vadd.f32 %v490, %v496
        %v500 = vmax.f32 %v498, 0.0
        %v501 = vmax.f32 %v499, 0.0
        %502 = vst [vmem:[%s203] sm:$0xff] %v500
        %503 = vst [vmem:[%s203 + $0x8] sm:$0xff] %v501
        %s504 = sand.u32 %s97, 1
        %s505 = scalar_lea.sflag [#allocation5], %s504
        %s506 = sand.u32 %s97, 1
        %s507 = smul.addr %s506, 16
        %s508 = scalar_lea.vmem [#allocation8], %s507
        // Predicated region
        $region41: #{tpu_custom_call.1} parent=31 // pred_check
          %p509 = pneg %p107
        $region42: #{tpu_custom_call.1} parent=31 // pred_check_branch
          %511 = sbr.rel (%p509) target = $region44
        $region43: #{tpu_custom_call.1} parent=31 // pred_region
          %s513 = ssub.s32 256, 256
          %514 = vsyncadd %s505, %s513
          %s515 = smul.addr %s21, 2
          %s516 = smul.addr %s515, 128
          %s517 = scalar_lea.hbm %s3, %s516
          %s518 = sshll.u32 %s508, 4
          %s519 = int_to_ptr.vmem [resolvable:$true] %s518
          %524 = dma.vmem_to_hbm [thread:$0]  %s519, 256, %s517, %s505, 128, 128, 8
        $region44: #{tpu_custom_call.1} parent=31 // pred_fallthru
          _
      $region32: #{tpu_custom_call.1} parent=5 // pred_fallthru
        _
      %p525 = scmp.le.s32.totalorder 2, %s16
      // Predicated region
      $region45: #{tpu_custom_call.1} parent=5 // pred_check
        %p526 = pneg %p525
      $region46: #{tpu_custom_call.1} parent=5 // pred_check_branch
        %528 = sbr.rel (%p526) target = $region48
      $region47: #{tpu_custom_call.1} parent=5 // pred_region
        %s529 = ssub.s32 %s16, 2
        // Predicated region
        $region49: #{tpu_custom_call.1} parent=47 // pred_check
          %p530 = pneg %p113
        $region50: #{tpu_custom_call.1} parent=47 // pred_check_branch
          %532 = sbr.rel (%p530) target = $region52
        $region51: #{tpu_custom_call.1} parent=47 // pred_region
          %s533 = sand.u32 %s98, 1
          %s534 = scalar_lea.sflag [#allocation5], %s533
          %s535 = sand.u32 %s98, 1
          %s536 = smul.addr %s535, 16
          %s537 = scalar_lea.vmem [#allocation8], %s536
          %538 = dma.done %s534, 256
        $region52: #{tpu_custom_call.1} parent=47 // pred_fallthru
          _
      $region48: #{tpu_custom_call.1} parent=5 // pred_fallthru
        _
    $region6: #{tpu_custom_call.1} parent=1 // loop_footer
      %s20 = sadd.s32 1, %s16
    $region7: #{tpu_custom_call.1} parent=1 // loop_footer_branch
      %15 = sbr.rel target = $region3
    $region8: #{tpu_custom_call.1} parent=1 // loop_exit
      _
    %539 = vsyncpa [#allocation4], 1
    %s540 = scalar_lea.sflag [#allocation4], 1
    %541 = vsyncpa %s540, 1
    %542 = vsyncpa [#allocation7], 1
    %543 = vsyncpa [#allocation5], 1
    %s544 = scalar_lea.sflag [#allocation5], 1
    %545 = vsyncpa %s544, 1

</llo_original>
